<compile_context>
chip_gen: v7x
topology: tpu7x:2x2x1
jax: 0.10.0
libtpu: 0.0.40
codegen_flags: <defaults>
</compile_context>

<pallas_src>
import functools

import jax
import jax.numpy as jnp
from jax.experimental import pallas as pl
from jax.experimental.pallas import tpu as pltpu

EPS = 1e-5  # torch.nn.BatchNorm2d default eps


# ------------------------------- helpers -------------------------------------

def _pad128(n):
    return -(-n // 128) * 128


def _vmem_capacity_bytes():
    try:
        return int(pltpu.get_tpu_info().vmem_capacity_bytes)
    except Exception:
        return 64 * 1024 * 1024  # conservative default (v7x per-TC VMEM)


def _legal_c_tiles(C, pack):
    tiles = {C}  # a full-extent block is always layout-legal
    if C % pack == 0:
        tiles |= {t for t in range(pack, C + 1, pack) if C % t == 0}
    return sorted(tiles)


def _pick_c_tile(C, per_channel_bytes, budget_bytes, pack):
    fitting = [t for t in _legal_c_tiles(C, pack)
               if t * per_channel_bytes <= budget_bytes]
    if not fitting:
        return None

    def n_tiles(t):
        return C // t

    # Prefer an even tile count (splits evenly across v7x's 2 TensorCores) and
    # >= 4 grid steps (DMA overlap); within a bucket take the largest tile.
    for pred in ((lambda t: n_tiles(t) % 2 == 0 and n_tiles(t) >= 4),
                 (lambda t: n_tiles(t) % 2 == 0),
                 (lambda t: n_tiles(t) >= 2),
                 (lambda t: True)):
        ok = [t for t in fitting if pred(t)]
        if ok:
            return max(ok)
    return None


def _for_each(n, body):
    """Run body(i) for i in [0, n); fully unrolled for short static counts."""
    if n <= 8:
        for i in range(n):
            body(i)
    else:
        pl.loop(0, n)(body)


# ----------------------------- Pallas kernels --------------------------------

def _bn_fused_kernel(x_ref, gb_ref, o_ref, s_acc, ss_acc, *, count, eps):
    # x_ref/o_ref: (N, c_tile, HW) in the native dtype; gb_ref: (c_tile, 2) f32.
    # Per-lane f32 accumulators (c_tile, HW): accumulate over the batch axis
    # first (cheap VALU adds), then one cross-lane (XLU) reduce per statistic.
    n = x_ref.shape[0]
    s_acc[...] = jnp.zeros_like(s_acc)
    ss_acc[...] = jnp.zeros_like(ss_acc)

    def accumulate(i):
        xi = x_ref[i].astype(jnp.float32)            # (c_tile, HW)
        s_acc[...] += xi
        ss_acc[...] += xi * xi

    _for_each(n, accumulate)

    inv = 1.0 / count
    mean = jnp.sum(s_acc[...], axis=1, keepdims=True) * inv       # (c_tile, 1)
    var = jnp.sum(ss_acc[...], axis=1, keepdims=True) * inv - mean * mean
    var = jnp.maximum(var, 0.0)                      # guard cancellation
    scale = gb_ref[:, 0:1] * jax.lax.rsqrt(var + eps)
    bias = gb_ref[:, 1:2] - mean * scale

    def normalize(i):
        xi = x_ref[i].astype(jnp.float32)
        o_ref[i] = (xi * scale + bias).astype(o_ref.dtype)

    _for_each(n, normalize)


def _bn_stats_kernel(x_ref, gb_ref, sb_ref, s_acc, ss_acc, *, count, eps):
    # Grid = (C_tiles, N_tiles, HW_tiles); reduction over the trailing axes.
    # x_ref: (n_tile, c_tile, hw_tile) native dtype; sb_ref: (c_tile, 2) f32.
    n_step, hw_step = pl.program_id(1), pl.program_id(2)

    @pl.when(jnp.logical_and(n_step == 0, hw_step == 0))
    def _():
        s_acc[...] = jnp.zeros_like(s_acc)
        ss_acc[...] = jnp.zeros_like(ss_acc)

    def accumulate(i):
        xi = x_ref[i].astype(jnp.float32)            # (c_tile, hw_tile)
        s_acc[...] += jnp.sum(xi, axis=1, keepdims=True)
        ss_acc[...] += jnp.sum(xi * xi, axis=1, keepdims=True)

    _for_each(x_ref.shape[0], accumulate)

    @pl.when(jnp.logical_and(n_step == pl.num_programs(1) - 1,
                             hw_step == pl.num_programs(2) - 1))
    def _():
        inv = 1.0 / count
        mean = s_acc[...] * inv
        var = jnp.maximum(ss_acc[...] * inv - mean * mean, 0.0)
        scale = gb_ref[:, 0:1] * jax.lax.rsqrt(var + eps)
        sb_ref[:, 0:1] = scale
        sb_ref[:, 1:2] = gb_ref[:, 1:2] - mean * scale


def _bn_apply_kernel(x_ref, sb_ref, o_ref):
    # x_ref/o_ref: (n_tile, c_tile, hw_tile); sb_ref: (c_tile, 2) f32.
    scale = sb_ref[:, 0:1]
    bias = sb_ref[:, 1:2]

    def normalize(i):
        xi = x_ref[i].astype(jnp.float32)
        o_ref[i] = (xi * scale + bias).astype(o_ref.dtype)

    _for_each(x_ref.shape[0], normalize)


# ------------------------------- wrapper --------------------------------------

def batchnorm2d(x, gamma, beta, eps=EPS, vmem_budget_bytes=None):
    """Training-mode torch.nn.BatchNorm2d forward. x is NCHW (any float dtype)."""
    N, C, H, W = x.shape
    HW = H * W
    hw_pad = _pad128(HW)
    x3 = x.reshape(N, C, HW)                         # free view; HW on the lane axis
    gb = jnp.stack([gamma.reshape(C).astype(jnp.float32),
                    beta.reshape(C).astype(jnp.float32)], axis=-1)    # (C, 2)
    count = float(N * HW)
    xbytes = jnp.dtype(x.dtype).itemsize
    pack = max(8, 32 // xbytes)                      # sublane packing: 8 / 16 / 32

    # Working-set budget: double-buffered input + output blocks + f32 scratch
    # / temporaries, sized against physical VMEM and capped so the same tiling
    # also fits v7x (64 MiB).  vmem_limit is explicit (v5e default is 16 MiB).
    cap = _vmem_capacity_bytes()
    if vmem_budget_bytes is None:
        ws_budget = min(48 * 1024 * 1024, (cap * 11) // 20)
    else:
        ws_budget = int(vmem_budget_bytes)
    vmem_limit = int(min((cap * 3) // 4, max(2 * ws_budget, 32 * 1024 * 1024)))

    # ---------------- fused path: x read once, y written once ----------------
    per_channel_fused = 4 * N * hw_pad * xbytes + 4 * hw_pad * 4
    c_tile = _pick_c_tile(C, per_channel_fused, ws_budget, pack)

    if c_tile is not None:
        out = pl.pallas_call(
            functools.partial(_bn_fused_kernel, count=count, eps=eps),
            out_shape=jax.ShapeDtypeStruct((N, C, HW), x.dtype),
            grid=(C // c_tile,),
            in_specs=[pl.BlockSpec((N, c_tile, HW), lambda j: (0, j, 0)),
                      pl.BlockSpec((c_tile, 2), lambda j: (j, 0))],
            out_specs=pl.BlockSpec((N, c_tile, HW), lambda j: (0, j, 0)),
            scratch_shapes=[pltpu.VMEM((c_tile, HW), jnp.float32),
                            pltpu.VMEM((c_tile, HW), jnp.float32)],
            compiler_params=pltpu.CompilerParams(
                dimension_semantics=("parallel",),
                vmem_limit_bytes=vmem_limit),
        )(x3, gb)
        return out.reshape(N, C, H, W)

    # ------------- two-pass path: stats reduction + parallel apply -----------
    per_hw = 4 * xbytes + 8                          # bytes/elem at n=1, c=c_min
    c_min = min(_legal_c_tiles(C, pack))
    if c_min * hw_pad * per_hw <= ws_budget:
        hw_tile, hw_tile_pad = HW, hw_pad
    else:
        cands = [d for d in range(128, HW, 128)
                 if HW % d == 0 and c_min * d * per_hw <= ws_budget]
        if cands:
            hw_tile = max(cands)
        else:
            # TODO(synk): no 128-multiple divisor of H*W fits the budget; fall
            # back to the full row and rely on vmem_limit (extreme spatial dims).
            hw_tile = HW
        hw_tile_pad = _pad128(hw_tile)

    c_tile = _pick_c_tile(C, hw_tile_pad * per_hw, ws_budget, pack) or c_min
    per_batch = c_tile * hw_tile_pad * 4 * xbytes
    fixed = 2 * c_tile * hw_tile_pad * 4
    n_cands = [d for d in range(1, N + 1)
               if N % d == 0 and d * per_batch + fixed <= ws_budget]
    n_tile = max(n_cands) if n_cands else 1

    grid = (C // c_tile, N // n_tile, HW // hw_tile)

    sb = pl.pallas_call(
        functools.partial(_bn_stats_kernel, count=count, eps=eps),
        out_shape=jax.ShapeDtypeStruct((C, 2), jnp.float32),
        grid=grid,
        in_specs=[pl.BlockSpec((n_tile, c_tile, hw_tile),
                               lambda j, n, h: (n, j, h)),
                  pl.BlockSpec((c_tile, 2), lambda j, n, h: (j, 0))],
        out_specs=pl.BlockSpec((c_tile, 2), lambda j, n, h: (j, 0)),
        scratch_shapes=[pltpu.VMEM((c_tile, 1), jnp.float32),
                        pltpu.VMEM((c_tile, 1), jnp.float32)],
        compiler_params=pltpu.CompilerParams(
            dimension_semantics=("parallel", "arbitrary", "arbitrary"),
            vmem_limit_bytes=vmem_limit),
    )(x3, gb)

    out = pl.pallas_call(
        _bn_apply_kernel,
        out_shape=jax.ShapeDtypeStruct((N, C, HW), x.dtype),
        grid=grid,
        in_specs=[pl.BlockSpec((n_tile, c_tile, hw_tile),
                               lambda j, n, h: (n, j, h)),
                  pl.BlockSpec((c_tile, 2), lambda j, n, h: (j, 0))],
        out_specs=pl.BlockSpec((n_tile, c_tile, hw_tile),
                               lambda j, n, h: (n, j, h)),
        compiler_params=pltpu.CompilerParams(
            dimension_semantics=("parallel", "parallel", "parallel"),
            vmem_limit_bytes=vmem_limit),
    )(x3, sb)
    return out.reshape(N, C, H, W)


# ------------------------------- reference ------------------------------------

def _reference_bn(x, gamma, beta, eps):
    x = x.astype(jnp.float32)
    mean = jnp.mean(x, axis=(0, 2, 3), keepdims=True)
    var = jnp.mean(jnp.square(x - mean), axis=(0, 2, 3), keepdims=True)
    g = gamma.reshape(1, -1, 1, 1).astype(jnp.float32)
    b = beta.reshape(1, -1, 1, 1).astype(jnp.float32)
    return (x - mean) * jax.lax.rsqrt(var + eps) * g + b


if __name__ == "__main__":
    key = jax.random.PRNGKey(0)
    k1, k2, k3, k4, k5, k6, k7 = jax.random.split(key, 7)

    # Case 1: fresh _bn(num_features=64), training mode (gamma=1, beta=0),
    # f32 input -> fused channel-tiled path (4 parallel channel tiles of 16).
    N, C, H, W = 2, 64, 16, 16
    x = jax.random.normal(k1, (N, C, H, W), jnp.float32)
    gamma = jnp.ones((C,), jnp.float32)
    beta = jnp.zeros((C,), jnp.float32)
    fwd = jax.jit(functools.partial(batchnorm2d, eps=EPS))
    y = fwd(x, gamma, beta)
    jax.block_until_ready(y)
    ref = _reference_bn(x, gamma, beta, EPS)
    assert y.shape == x.shape and y.dtype == x.dtype
    err = float(jnp.max(jnp.abs(y.astype(jnp.float32) - ref)))
    assert err < 1e-3, err

    # Case 2: tiny VMEM budget forces the two-pass path with batch- and
    # HW-tiled reduction (grid = (2, 4, 2)); non-trivial affine params.
    N2, C2, H2, W2 = 4, 16, 8, 32
    x2 = jax.random.normal(k2, (N2, C2, H2, W2), jnp.float32)
    g2 = 1.0 + 0.1 * jax.random.normal(k3, (C2,), jnp.float32)
    b2 = 0.1 * jax.random.normal(k4, (C2,), jnp.float32)
    fwd2 = jax.jit(functools.partial(batchnorm2d, eps=EPS,
                                     vmem_budget_bytes=32 * 1024))
    y2 = fwd2(x2, g2, b2)
    jax.block_until_ready(y2)
    ref2 = _reference_bn(x2, g2, b2, EPS)
    err2 = float(jnp.max(jnp.abs(y2.astype(jnp.float32) - ref2)))
    assert y2.shape == x2.shape and y2.dtype == x2.dtype
    assert err2 < 1e-3, err2

    # Case 3: bf16 input -> dtype-native HBM I/O through the fused path
    # (c_tile multiple of 16 for sublane packing), f32 accumulation inside.
    N3, C3, H3, W3 = 2, 32, 16, 8
    x3 = jax.random.normal(k5, (N3, C3, H3, W3), jnp.float32).astype(jnp.bfloat16)
    g3 = 1.0 + 0.1 * jax.random.normal(k6, (C3,), jnp.float32)
    b3 = 0.1 * jax.random.normal(k7, (C3,), jnp.float32)
    fwd3 = jax.jit(functools.partial(batchnorm2d, eps=EPS))
    y3 = fwd3(x3, g3, b3)
    jax.block_until_ready(y3)
    ref3 = _reference_bn(x3, g3, b3, EPS)
    err3 = float(jnp.max(jnp.abs(y3.astype(jnp.float32) - ref3)))
    assert y3.shape == x3.shape and y3.dtype == x3.dtype
    assert err3 < 5e-2, err3

    print("KERNEL_OK")
</pallas_src>

<mosaic_0001>
module attributes {stable_mosaic.version = 11 : i64} {
  func.func @_bn_fused_kernel(%arg0: i32, %arg1: memref<2x16x256xf32, #tpu.memory_space<vmem>>, %arg2: memref<16x2xf32, #tpu.memory_space<vmem>>, %arg3: memref<2x16x256xf32, #tpu.memory_space<vmem>>, %arg4: memref<16x256xf32, #tpu.memory_space<vmem>>, %arg5: memref<16x256xf32, #tpu.memory_space<vmem>>) attributes {dimension_semantics = [#tpu.dimension_semantics<parallel>], iteration_bounds = array<i64: 4>, scalar_prefetch = 0 : i64, scratch_operands = 2 : i64, tpu.core_type = #tpu.core_type<tc>, window_params = [{transform_indices = @transform_0, window_bounds = array<i64: 2, 16, 256>}, {transform_indices = @transform_1, window_bounds = array<i64: 16, 2>}, {transform_indices = @transform_2, window_bounds = array<i64: 2, 16, 256>}]} {
    %cst = arith.constant 0.000000e+00 : f32
    %0 = vector.broadcast %cst : f32 to vector<16x256xf32>
    %c0 = arith.constant 0 : index
    %c0_0 = arith.constant 0 : index
    %1 = vector.load %arg4[%c0, %c0_0] : memref<16x256xf32, #tpu.memory_space<vmem>>, vector<16x256xf32>
    tpu.vector_store %arg4[%c0, %c0_0], %0 {strides = array<i32>} : memref<16x256xf32, #tpu.memory_space<vmem>>, vector<16x256xf32>,
    %cst_1 = arith.constant 0.000000e+00 : f32
    %2 = vector.broadcast %cst_1 : f32 to vector<16x256xf32>
    %c0_2 = arith.constant 0 : index
    %c0_3 = arith.constant 0 : index
    %3 = vector.load %arg5[%c0_2, %c0_3] : memref<16x256xf32, #tpu.memory_space<vmem>>, vector<16x256xf32>
    tpu.vector_store %arg5[%c0_2, %c0_3], %2 {strides = array<i32>} : memref<16x256xf32, #tpu.memory_space<vmem>>, vector<16x256xf32>,
    %c0_4 = arith.constant 0 : index
    %c0_5 = arith.constant 0 : index
    %c0_6 = arith.constant 0 : index
    %4 = vector.load %arg1[%c0_4, %c0_5, %c0_6] : memref<2x16x256xf32, #tpu.memory_space<vmem>>, vector<1x16x256xf32>
    %5 = vector.shape_cast %4 : vector<1x16x256xf32> to vector<16x256xf32>
    %c0_7 = arith.constant 0 : index
    %c0_8 = arith.constant 0 : index
    %6 = vector.load %arg4[%c0_7, %c0_8] : memref<16x256xf32, #tpu.memory_space<vmem>>, vector<16x256xf32>
    %7 = arith.addf %6, %5 : vector<16x256xf32>
    %c0_9 = arith.constant 0 : index
    %c0_10 = arith.constant 0 : index
    %8 = vector.load %arg4[%c0_9, %c0_10] : memref<16x256xf32, #tpu.memory_space<vmem>>, vector<16x256xf32>
    tpu.vector_store %arg4[%c0_9, %c0_10], %7 {strides = array<i32>} : memref<16x256xf32, #tpu.memory_space<vmem>>, vector<16x256xf32>,
    %c0_11 = arith.constant 0 : index
    %c0_12 = arith.constant 0 : index
    %9 = vector.load %arg5[%c0_11, %c0_12] : memref<16x256xf32, #tpu.memory_space<vmem>>, vector<16x256xf32>
    %10 = arith.mulf %5, %5 : vector<16x256xf32>
    %11 = arith.addf %9, %10 : vector<16x256xf32>
    %c0_13 = arith.constant 0 : index
    %c0_14 = arith.constant 0 : index
    %12 = vector.load %arg5[%c0_13, %c0_14] : memref<16x256xf32, #tpu.memory_space<vmem>>, vector<16x256xf32>
    tpu.vector_store %arg5[%c0_13, %c0_14], %11 {strides = array<i32>} : memref<16x256xf32, #tpu.memory_space<vmem>>, vector<16x256xf32>,
    %c1 = arith.constant 1 : index
    %c0_15 = arith.constant 0 : index
    %c0_16 = arith.constant 0 : index
    %13 = vector.load %arg1[%c1, %c0_15, %c0_16] : memref<2x16x256xf32, #tpu.memory_space<vmem>>, vector<1x16x256xf32>
    %14 = vector.shape_cast %13 : vector<1x16x256xf32> to vector<16x256xf32>
    %c0_17 = arith.constant 0 : index
    %c0_18 = arith.constant 0 : index
    %15 = vector.load %arg4[%c0_17, %c0_18] : memref<16x256xf32, #tpu.memory_space<vmem>>, vector<16x256xf32>
    %16 = arith.addf %15, %14 : vector<16x256xf32>
    %c0_19 = arith.constant 0 : index
    %c0_20 = arith.constant 0 : index
    %17 = vector.load %arg4[%c0_19, %c0_20] : memref<16x256xf32, #tpu.memory_space<vmem>>, vector<16x256xf32>
    tpu.vector_store %arg4[%c0_19, %c0_20], %16 {strides = array<i32>} : memref<16x256xf32, #tpu.memory_space<vmem>>, vector<16x256xf32>,
    %c0_21 = arith.constant 0 : index
    %c0_22 = arith.constant 0 : index
    %18 = vector.load %arg5[%c0_21, %c0_22] : memref<16x256xf32, #tpu.memory_space<vmem>>, vector<16x256xf32>
    %19 = arith.mulf %14, %14 : vector<16x256xf32>
    %20 = arith.addf %18, %19 : vector<16x256xf32>
    %c0_23 = arith.constant 0 : index
    %c0_24 = arith.constant 0 : index
    %21 = vector.load %arg5[%c0_23, %c0_24] : memref<16x256xf32, #tpu.memory_space<vmem>>, vector<16x256xf32>
    tpu.vector_store %arg5[%c0_23, %c0_24], %20 {strides = array<i32>} : memref<16x256xf32, #tpu.memory_space<vmem>>, vector<16x256xf32>,
    %c0_25 = arith.constant 0 : index
    %c0_26 = arith.constant 0 : index
    %22 = vector.load %arg4[%c0_25, %c0_26] : memref<16x256xf32, #tpu.memory_space<vmem>>, vector<16x256xf32>
    %cst_27 = arith.constant dense<0.000000e+00> : vector<16xf32>
    %23 = vector.multi_reduction <add>, %22, %cst_27 [1] : vector<16x256xf32> to vector<16xf32>
    %24 = vector.shape_cast %23 : vector<16xf32> to vector<16x1xf32>
    %cst_28 = arith.constant 0.001953125 : f32
    %25 = vector.broadcast %cst_28 : f32 to vector<16x1xf32>
    %26 = arith.mulf %24, %25 : vector<16x1xf32>
    %c0_29 = arith.constant 0 : index
    %c0_30 = arith.constant 0 : index
    %27 = vector.load %arg5[%c0_29, %c0_30] : memref<16x256xf32, #tpu.memory_space<vmem>>, vector<16x256xf32>
    %cst_31 = arith.constant dense<0.000000e+00> : vector<16xf32>
    %28 = vector.multi_reduction <add>, %27, %cst_31 [1] : vector<16x256xf32> to vector<16xf32>
    %29 = vector.shape_cast %28 : vector<16xf32> to vector<16x1xf32>
    %cst_32 = arith.constant 0.001953125 : f32
    %30 = vector.broadcast %cst_32 : f32 to vector<16x1xf32>
    %31 = arith.mulf %29, %30 : vector<16x1xf32>
    %32 = arith.mulf %26, %26 : vector<16x1xf32>
    %33 = arith.subf %31, %32 : vector<16x1xf32>
    %cst_33 = arith.constant 0.000000e+00 : f32
    %34 = vector.broadcast %cst_33 : f32 to vector<16x1xf32>
    %35 = arith.maximumf %33, %34 : vector<16x1xf32>
    %c0_34 = arith.constant 0 : index
    %c0_35 = arith.constant 0 : index
    %36 = vector.load %arg2[%c0_34, %c0_35] : memref<16x2xf32, #tpu.memory_space<vmem>>, vector<16x1xf32>
    %cst_36 = arith.constant 9.99999974E-6 : f32
    %37 = vector.broadcast %cst_36 : f32 to vector<16x1xf32>
    %38 = arith.addf %35, %37 : vector<16x1xf32>
    %39 = math.rsqrt %38 : vector<16x1xf32>
    %40 = arith.mulf %36, %39 : vector<16x1xf32>
    %c0_37 = arith.constant 0 : index
    %c1_38 = arith.constant 1 : index
    %41 = vector.load %arg2[%c0_37, %c1_38] : memref<16x2xf32, #tpu.memory_space<vmem>>, vector<16x1xf32>
    %42 = arith.mulf %26, %40 : vector<16x1xf32>
    %43 = arith.subf %41, %42 : vector<16x1xf32>
    %c0_39 = arith.constant 0 : index
    %c0_40 = arith.constant 0 : index
    %c0_41 = arith.constant 0 : index
    %44 = vector.load %arg1[%c0_39, %c0_40, %c0_41] : memref<2x16x256xf32, #tpu.memory_space<vmem>>, vector<1x16x256xf32>
    %45 = vector.shape_cast %44 : vector<1x16x256xf32> to vector<16x256xf32>
    %46 = vector.broadcast %40 : vector<16x1xf32> to vector<16x256xf32>
    %47 = arith.mulf %45, %46 : vector<16x256xf32>
    %48 = vector.broadcast %43 : vector<16x1xf32> to vector<16x256xf32>
    %49 = arith.addf %47, %48 : vector<16x256xf32>
    %c0_42 = arith.constant 0 : index
    %c0_43 = arith.constant 0 : index
    %c0_44 = arith.constant 0 : index
    %50 = vector.load %arg3[%c0_42, %c0_43, %c0_44] : memref<2x16x256xf32, #tpu.memory_space<vmem>>, vector<1x16x256xf32>
    %51 = vector.shape_cast %50 : vector<1x16x256xf32> to vector<16x256xf32>
    %52 = vector.shape_cast %49 : vector<16x256xf32> to vector<1x16x256xf32>
    tpu.vector_store %arg3[%c0_42, %c0_43, %c0_44], %52 {strides = array<i32>} : memref<2x16x256xf32, #tpu.memory_space<vmem>>, vector<1x16x256xf32>,
    %c1_45 = arith.constant 1 : index
    %c0_46 = arith.constant 0 : index
    %c0_47 = arith.constant 0 : index
    %53 = vector.load %arg1[%c1_45, %c0_46, %c0_47] : memref<2x16x256xf32, #tpu.memory_space<vmem>>, vector<1x16x256xf32>
    %54 = vector.shape_cast %53 : vector<1x16x256xf32> to vector<16x256xf32>
    %55 = vector.broadcast %40 : vector<16x1xf32> to vector<16x256xf32>
    %56 = arith.mulf %54, %55 : vector<16x256xf32>
    %57 = vector.broadcast %43 : vector<16x1xf32> to vector<16x256xf32>
    %58 = arith.addf %56, %57 : vector<16x256xf32>
    %c1_48 = arith.constant 1 : index
    %c0_49 = arith.constant 0 : index
    %c0_50 = arith.constant 0 : index
    %59 = vector.load %arg3[%c1_48, %c0_49, %c0_50] : memref<2x16x256xf32, #tpu.memory_space<vmem>>, vector<1x16x256xf32>
    %60 = vector.shape_cast %59 : vector<1x16x256xf32> to vector<16x256xf32>
    %61 = vector.shape_cast %58 : vector<16x256xf32> to vector<1x16x256xf32>
    tpu.vector_store %arg3[%c1_48, %c0_49, %c0_50], %61 {strides = array<i32>} : memref<2x16x256xf32, #tpu.memory_space<vmem>>, vector<1x16x256xf32>,
    return
  }
  func.func @transform_0(%arg0: i32) -> (i32, i32, i32) {
    %c0_i32 = arith.constant 0 : i32
    %c0_i32_0 = arith.constant 0 : i32
    %c0_i32_1 = arith.constant 0 : i32
    return %c0_i32, %arg0, %c0_i32_0 : i32, i32, i32
  }
  func.func @transform_1(%arg0: i32) -> (i32, i32) {
    %c0_i32 = arith.constant 0 : i32
    %c0_i32_0 = arith.constant 0 : i32
    return %arg0, %c0_i32 : i32, i32
  }
  func.func @transform_2(%arg0: i32) -> (i32, i32, i32) {
    %c0_i32 = arith.constant 0 : i32
    %c0_i32_0 = arith.constant 0 : i32
    %c0_i32_1 = arith.constant 0 : i32
    return %c0_i32, %arg0, %c0_i32_0 : i32, i32, i32
  }
}

</mosaic_0001>

<llo_original>
// kernel: batchnorm2d.1
$region0: #{batchnorm2d.1}
  #allocation0 [shape = 'u32[]', space=smem, size = 0x4, offset = 0x4, fixed_abs, tag = 'smem constant byte address 0x4 - core index']
  #allocation1 [shape = 'u32[144,128]{1,0:T(1,128)}', space=vmem, size = 0x12000, scoped, tag = 'internal scratch']
  #allocation2 [shape = 'f32[16,256]{1,0:T(8,128)}', space=vmem, size = 0x4000, scoped, tag = 'scratch operand']
  #allocation3 [shape = 'f32[16,256]{1,0:T(8,128)}', space=vmem, size = 0x4000, scoped, tag = 'scratch operand']
  %s0 = inlined_call_operand.vmem [shape: f32[2,64,256], index: 0, kind: input, shape index: {}]
  %s1 = inlined_call_operand.vmem [shape: f32[64,2], index: 1, kind: input, shape index: {}]
  %s2 = inlined_call_operand.vmem [shape: f32[2,64,256], index: 2, kind: output, shape index: {}]
  %s3 = sld [smem:[#allocation0]]
  $region83: #{batchnorm2d.1} parent=0
    _
  %s5 = ssub.s32 1, %s3
  %s6 = scalar_select 0, %s5, %s3
  $region1: #{batchnorm2d.1} parent=0
    #allocation4 [shape = 'u8[65536]{0}', space=vmem, size = 0x10000, scoped, tag = 'input window, operand 0']
    #allocation5 [shape = 'u8[65536]{0}', space=vmem, size = 0x10000, scoped, tag = 'output window, operand 0']
    loop: start=0, step=1, limit=6
    $region2: #{batchnorm2d.1} parent=1 // loop_pre_header
      _
    $region3: #{batchnorm2d.1} parent=1 // loop_header
      %s8 = sphi 0, %s12
      %p9 = scmp.ge.s32.totalorder %s8, 6
      %s18 = sphi 0, %s20
      %s21 = sphi 0, %s18
      %s22 = sphi 0, %s21
      %s38 = sphi 0, %s22
      %s44 = sphi 0, %s46
      %s47 = sphi 0, %s44
      %s48 = sphi 0, %s47
      %s64 = sphi 0, %s48
      %s70 = sphi 0, %s72
      %s73 = sphi 0, %s70
      %s74 = sphi 0, %s73
      %s90 = sphi 0, %s74
    $region4: #{batchnorm2d.1} parent=1 // loop_header_branch
      %11 = sbr.rel (%p9) target = $region8
    $region5: #{batchnorm2d.1} parent=1 // loop_body
      %s13 = ssub.s32 %s8, 1
      %s14 = ssub.s32 %s8, 2
      %s15 = sadd.s32 %s8, 1
      %s16 = ssub.s32 %s8, %s15
      %p17 = scmp.eq.s32.totalorder %s16, 0
      %s19 = sadd.s32 %s18, 1
      %s20 = scalar_select %p17, %s18, %s19
      %p23 = pneg %p17
      %p24 = scmp.eq.s32.totalorder %s8, 3
      %p25 = por %p23, %p24
      %p26 = scmp.ne.s32.totalorder %s18, %s21
      %p27 = scmp.eq.s32.totalorder %s8, 0
      %p28 = por %p26, %p27
      %p29 = scmp.ne.s32.totalorder %s18, %s21
      %p30 = scmp.eq.s32.totalorder %s13, 3
      %p31 = por %p29, %p30
      %p32 = scmp.ne.s32.totalorder %s21, %s22
      %p33 = scmp.eq.s32.totalorder %s13, 0
      %p34 = por %p32, %p33
      %p35 = scmp.ne.s32.totalorder %s21, %s22
      %p36 = scmp.eq.s32.totalorder %s14, 3
      %p37 = por %p35, %p36
      %p39 = scmp.ne.s32.totalorder %s22, %s38
      %p40 = scmp.eq.s32.totalorder %s14, 0
      %p41 = por %p39, %p40
      %s42 = ssub.s32 %s8, %s15
      %p43 = scmp.eq.s32.totalorder %s42, 0
      %s45 = sadd.s32 %s44, 1
      %s46 = scalar_select %p43, %s44, %s45
      %p49 = pneg %p43
      %p50 = scmp.eq.s32.totalorder %s8, 3
      %p51 = por %p49, %p50
      %p52 = scmp.ne.s32.totalorder %s44, %s47
      %p53 = scmp.eq.s32.totalorder %s8, 0
      %p54 = por %p52, %p53
      %p55 = scmp.ne.s32.totalorder %s44, %s47
      %p56 = scmp.eq.s32.totalorder %s13, 3
      %p57 = por %p55, %p56
      %p58 = scmp.ne.s32.totalorder %s47, %s48
      %p59 = scmp.eq.s32.totalorder %s13, 0
      %p60 = por %p58, %p59
      %p61 = scmp.ne.s32.totalorder %s47, %s48
      %p62 = scmp.eq.s32.totalorder %s14, 3
      %p63 = por %p61, %p62
      %p65 = scmp.ne.s32.totalorder %s48, %s64
      %p66 = scmp.eq.s32.totalorder %s14, 0
      %p67 = por %p65, %p66
      %s68 = ssub.s32 %s8, %s15
      %p69 = scmp.eq.s32.totalorder %s68, 0
      %s71 = sadd.s32 %s70, 1
      %s72 = scalar_select %p69, %s70, %s71
      %p75 = pneg %p69
      %p76 = scmp.eq.s32.totalorder %s8, 3
      %p77 = por %p75, %p76
      %p78 = scmp.ne.s32.totalorder %s70, %s73
      %p79 = scmp.eq.s32.totalorder %s8, 0
      %p80 = por %p78, %p79
      %p81 = scmp.ne.s32.totalorder %s70, %s73
      %p82 = scmp.eq.s32.totalorder %s13, 3
      %p83 = por %p81, %p82
      %p84 = scmp.ne.s32.totalorder %s73, %s74
      %p85 = scmp.eq.s32.totalorder %s13, 0
      %p86 = por %p84, %p85
      %p87 = scmp.ne.s32.totalorder %s73, %s74
      %p88 = scmp.eq.s32.totalorder %s14, 3
      %p89 = por %p87, %p88
      %p91 = scmp.ne.s32.totalorder %s74, %s90
      %p92 = scmp.eq.s32.totalorder %s14, 0
      %p93 = por %p91, %p92
      %p94 = scmp.le.s32.totalorder 1, %s8
      %p95 = scmp.lt.s32.totalorder %s8, 5
      %p96 = pnand %p94, %p95
      %p97 = pneg %p96
      // Predicated region
      $region9: #{batchnorm2d.1} parent=5 // pred_check
        _
      $region10: #{batchnorm2d.1} parent=5 // pred_check_branch
        %99 = sbr.rel (%p96) target = $region12
      $region11: #{batchnorm2d.1} parent=5 // pred_region
        %s100 = ssub.s32 %s8, 1
      $region12: #{batchnorm2d.1} parent=5 // pred_fallthru
        _
      %p101 = scmp.lt.s32.totalorder %s8, 4
      // Predicated region
      $region13: #{batchnorm2d.1} parent=5 // pred_check
        %p102 = pneg %p101
      $region14: #{batchnorm2d.1} parent=5 // pred_check_branch
        %104 = sbr.rel (%p102) target = $region16
      $region15: #{batchnorm2d.1} parent=5 // pred_region
        // Predicated region
        $region17: #{batchnorm2d.1} parent=15 // pred_check
          %p105 = pneg %p28
        $region18: #{batchnorm2d.1} parent=15 // pred_check_branch
          %107 = sbr.rel (%p105) target = $region20
        $region19: #{batchnorm2d.1} parent=15 // pred_region
          %s108 = sand.u32 %s18, 1
          %s109 = sand.u32 %s18, 1
          %s110 = smul.addr %s109, 64
          %s111 = scalar_lea.vmem [#allocation4], %s110
          %s112 = smul.u32 2, %s8
          %s113 = smul.addr %s112, 2
          %s114 = smul.addr %s113, 8
          %s115 = scalar_lea.vmem %s0, %s114
          // Predicated region
          $region21: #{batchnorm2d.1} parent=19 // pred_check
            _
          $region22: #{batchnorm2d.1} parent=19 // pred_check_branch
            %117 = sbr.rel (0) target = $region24
          $region23: #{batchnorm2d.1} parent=19 // pred_region
            // Predicated region
            $region25: #{batchnorm2d.1} parent=23 // pred_check
              _
            $region26: #{batchnorm2d.1} parent=23 // pred_check_branch
              %119 = sbr.rel (0) target = $region28
            $region27: #{batchnorm2d.1} parent=23 // pred_region
              loop: start=0, step=1, limit=1
              $region29: #{batchnorm2d.1} parent=27 // loop_pre_header
                _
              $region30: #{batchnorm2d.1} parent=27 // loop_header
                %s121 = sphi 0, %s125
                %p122 = scmp.ge.s32.totalorder %s121, 1
                %s126 = sphi %s115, %s115
                %s127 = sphi %s111, %s111
              $region31: #{batchnorm2d.1} parent=27 // loop_header_branch
                %124 = sbr.rel (%p122) target = $region35
              $region32: #{batchnorm2d.1} parent=27 // loop_body
                %v128 = vld [vmem:[%s126] sm:$0xff]
                %129 = vst [vmem:[%s127] sm:$0xff] %v128
                %v130 = vld [vmem:[%s126 + $0x8] sm:$0xff]
                %131 = vst [vmem:[%s127 + $0x8] sm:$0xff] %v130
                %v132 = vld [vmem:[%s126 + $0x10] sm:$0xff]
                %133 = vst [vmem:[%s127 + $0x10] sm:$0xff] %v132
                %v134 = vld [vmem:[%s126 + $0x18] sm:$0xff]
                %135 = vst [vmem:[%s127 + $0x18] sm:$0xff] %v134
                %v136 = vld [vmem:[%s126 + $0x80] sm:$0xff]
                %137 = vst [vmem:[%s127 + $0x20] sm:$0xff] %v136
                %v138 = vld [vmem:[%s126 + $0x88] sm:$0xff]
                %139 = vst [vmem:[%s127 + $0x28] sm:$0xff] %v138
                %v140 = vld [vmem:[%s126 + $0x90] sm:$0xff]
                %141 = vst [vmem:[%s127 + $0x30] sm:$0xff] %v140
                %v142 = vld [vmem:[%s126 + $0x98] sm:$0xff]
                %143 = vst [vmem:[%s127 + $0x38] sm:$0xff] %v142
              $region33: #{batchnorm2d.1} parent=27 // loop_footer
                %s125 = sadd.s32 1, %s121
              $region34: #{batchnorm2d.1} parent=27 // loop_footer_branch
                %120 = sbr.rel target = $region30
              $region35: #{batchnorm2d.1} parent=27 // loop_exit
                _
            $region28: #{batchnorm2d.1} parent=23 // pred_fallthru
              _
            // Predicated region
            $region36: #{batchnorm2d.1} parent=23 // pred_check
              _
            $region37: #{batchnorm2d.1} parent=23 // pred_check_branch
              %145 = sbr.rel target = $region39
            $region38: #{batchnorm2d.1} parent=23 // pred_region
              _
            $region39: #{batchnorm2d.1} parent=23 // pred_fallthru
              _
          $region24: #{batchnorm2d.1} parent=19 // pred_fallthru
            _
          %146 = vnop
        $region20: #{batchnorm2d.1} parent=15 // pred_fallthru
          _
        // Predicated region
        $region40: #{batchnorm2d.1} parent=15 // pred_check
          %p147 = pneg %p54
        $region41: #{batchnorm2d.1} parent=15 // pred_check_branch
          %149 = sbr.rel (%p147) target = $region43
        $region42: #{batchnorm2d.1} parent=15 // pred_region
          %s150 = smul.u32 2, %s8
          %p151 = scmp.lt.s32.totalorder %s150, 7
          %s152 = scalar_select %p151, %s150, 7
          %s153 = smul.addr %s152, 8
          %s154 = scalar_lea.vmem %s1, %s153
          %s155 = smul.u32 2, %s8
        $region43: #{batchnorm2d.1} parent=15 // pred_fallthru
          _
      $region16: #{batchnorm2d.1} parent=5 // pred_fallthru
        _
      %p156 = scmp.le.s32.totalorder 1, %s8
      %p157 = scmp.lt.s32.totalorder %s8, 5
      %p158 = pnand %p156, %p157
      %p159 = pneg %p158
      // Predicated region
      $region44: #{batchnorm2d.1} parent=5 // pred_check
        _
      $region45: #{batchnorm2d.1} parent=5 // pred_check_branch
        %161 = sbr.rel (%p158) target = $region47
      $region46: #{batchnorm2d.1} parent=5 // pred_region
        %s162 = ssub.s32 %s8, 1
        %s163 = sand.u32 %s21, 1
        %s164 = sand.u32 %s21, 1
        %s165 = smul.addr %s164, 64
        %s166 = scalar_lea.vmem [#allocation4], %s165
        // Predicated region
        $region48: #{batchnorm2d.1} parent=46 // pred_check
          %p167 = pneg %p34
        $region49: #{batchnorm2d.1} parent=46 // pred_check_branch
          %169 = sbr.rel (%p167) target = $region51
        $region50: #{batchnorm2d.1} parent=46 // pred_region
          _
        $region51: #{batchnorm2d.1} parent=46 // pred_fallthru
          _
        %s170 = sand.u32 %s21, 1
        %s171 = sand.u32 %s21, 1
        %s172 = smul.addr %s171, 64
        %s173 = scalar_lea.vmem [#allocation4], %s172
        %p174 = pneg %p34
        %p175 = pneg %p31
        %s176 = smul.u32 2, %s13
        %p177 = scmp.lt.s32.totalorder %s176, 7
        %s178 = scalar_select %p177, %s176, 7
        %s179 = smul.addr %s178, 8
        %s180 = scalar_lea.vmem %s1, %s179
        %p181 = pneg %p60
        %p182 = pneg %p57
        %p183 = pneg %p86
        %p184 = pneg %p83
        %s185 = sand.u32 %s73, 1
        %s186 = sand.u32 %s73, 1
        %s187 = smul.addr %s186, 64
        %s188 = scalar_lea.vmem [#allocation5], %s187
        %s189 = smul.u32 2, %s13
        %s190 = smul.u32 2, %s13
        %p191 = scmp.lt.s32.totalorder %s190, 7
        %s192 = scalar_select %p191, %s190, 7
        %s193 = smul.addr %s192, 8
        %s194 = scalar_lea.vmem %s1, %s193
        %s195 = smul.u32 2, %s13
        %s196 = smul.u32 2, %s13
        %197 = vst [vmem:[#allocation2] sm:$0xff] 0.0
        %198 = vst [vmem:[#allocation2 + $0x8] sm:$0xff] 0.0
        %199 = vst [vmem:[#allocation2 + $0x10] sm:$0xff] 0.0
        %200 = vst [vmem:[#allocation2 + $0x18] sm:$0xff] 0.0
        %201 = vst [vmem:[#allocation3] sm:$0xff] 0.0
        %202 = vst [vmem:[#allocation3 + $0x8] sm:$0xff] 0.0
        %203 = vst [vmem:[#allocation3 + $0x10] sm:$0xff] 0.0
        %204 = vst [vmem:[#allocation3 + $0x18] sm:$0xff] 0.0
        %v205 = vld [vmem:[%s166] sm:$0xff]
        %v206 = vld [vmem:[%s166 + $0x8] sm:$0xff]
        %v207 = vld [vmem:[%s166 + $0x10] sm:$0xff]
        %v208 = vld [vmem:[%s166 + $0x18] sm:$0xff]
        %v209 = vld [vmem:[#allocation2] sm:$0xff]
        %v210 = vld [vmem:[#allocation2 + $0x8] sm:$0xff]
        %v211 = vld [vmem:[#allocation2 + $0x10] sm:$0xff]
        %v212 = vld [vmem:[#allocation2 + $0x18] sm:$0xff]
        %v213 = vadd.f32 %v209, %v205
        %v214 = vadd.f32 %v210, %v206
        %v215 = vadd.f32 %v211, %v207
        %v216 = vadd.f32 %v212, %v208
        %217 = vst [vmem:[#allocation2] sm:$0xff] %v213
        %218 = vst [vmem:[#allocation2 + $0x8] sm:$0xff] %v214
        %219 = vst [vmem:[#allocation2 + $0x10] sm:$0xff] %v215
        %220 = vst [vmem:[#allocation2 + $0x18] sm:$0xff] %v216
        %v221 = vld [vmem:[#allocation3] sm:$0xff]
        %v222 = vld [vmem:[#allocation3 + $0x8] sm:$0xff]
        %v223 = vld [vmem:[#allocation3 + $0x10] sm:$0xff]
        %v224 = vld [vmem:[#allocation3 + $0x18] sm:$0xff]
        %v225 = vmul.f32 %v205, %v205
        %v226 = vmul.f32 %v206, %v206
        %v227 = vmul.f32 %v207, %v207
        %v228 = vmul.f32 %v208, %v208
        %v229 = vadd.f32 %v221, %v225
        %v230 = vadd.f32 %v222, %v226
        %v231 = vadd.f32 %v223, %v227
        %v232 = vadd.f32 %v224, %v228
        %233 = vst [vmem:[#allocation3] sm:$0xff] %v229
        %234 = vst [vmem:[#allocation3 + $0x8] sm:$0xff] %v230
        %235 = vst [vmem:[#allocation3 + $0x10] sm:$0xff] %v231
        %236 = vst [vmem:[#allocation3 + $0x18] sm:$0xff] %v232
        %s237 = scalar_lea.vmem %s166, 32 [#allocation4]
        %v238 = vld [vmem:[%s237] sm:$0xff]
        %v239 = vld [vmem:[%s237 + $0x8] sm:$0xff]
        %v240 = vld [vmem:[%s237 + $0x10] sm:$0xff]
        %v241 = vld [vmem:[%s237 + $0x18] sm:$0xff]
        %v242 = vld [vmem:[#allocation2] sm:$0xff]
        %v243 = vld [vmem:[#allocation2 + $0x8] sm:$0xff]
        %v244 = vld [vmem:[#allocation2 + $0x10] sm:$0xff]
        %v245 = vld [vmem:[#allocation2 + $0x18] sm:$0xff]
        %v246 = vadd.f32 %v242, %v238
        %v247 = vadd.f32 %v243, %v239
        %v248 = vadd.f32 %v244, %v240
        %v249 = vadd.f32 %v245, %v241
        %250 = vst [vmem:[#allocation2] sm:$0xff] %v246
        %251 = vst [vmem:[#allocation2 + $0x8] sm:$0xff] %v247
        %252 = vst [vmem:[#allocation2 + $0x10] sm:$0xff] %v248
        %253 = vst [vmem:[#allocation2 + $0x18] sm:$0xff] %v249
        %v254 = vld [vmem:[#allocation3] sm:$0xff]
        %v255 = vld [vmem:[#allocation3 + $0x8] sm:$0xff]
        %v256 = vld [vmem:[#allocation3 + $0x10] sm:$0xff]
        %v257 = vld [vmem:[#allocation3 + $0x18] sm:$0xff]
        %v258 = vmul.f32 %v238, %v238
        %v259 = vmul.f32 %v239, %v239
        %v260 = vmul.f32 %v240, %v240
        %v261 = vmul.f32 %v241, %v241
        %v262 = vadd.f32 %v254, %v258
        %v263 = vadd.f32 %v255, %v259
        %v264 = vadd.f32 %v256, %v260
        %v265 = vadd.f32 %v257, %v261
        %266 = vst [vmem:[#allocation3] sm:$0xff] %v262
        %267 = vst [vmem:[#allocation3 + $0x8] sm:$0xff] %v263
        %268 = vst [vmem:[#allocation3 + $0x10] sm:$0xff] %v264
        %269 = vst [vmem:[#allocation3 + $0x18] sm:$0xff] %v265
        %v270 = vld [vmem:[#allocation2] sm:$0xff]
        %v271 = vld [vmem:[#allocation2 + $0x8] sm:$0xff]
        %v272 = vld [vmem:[#allocation2 + $0x10] sm:$0xff]
        %v273 = vld [vmem:[#allocation2 + $0x18] sm:$0xff]
        %v274 = vadd.f32 %v270, %v271
        %275 = vadd.xlane.f32.xlu0 %v274
        %v276 = vpop.xlane.xlu0 %275
        %v277 = vadd.f32 %v272, %v273
        %278 = vadd.xlane.f32.xlu0 %v277
        %v279 = vpop.xlane.xlu0 %278
        %v280 = vmul.f32 %v276, 0.001953125
        %v281 = vmul.f32 %v279, 0.001953125
        %v282 = vld [vmem:[#allocation3] sm:$0xff]
        %v283 = vld [vmem:[#allocation3 + $0x8] sm:$0xff]
        %v284 = vld [vmem:[#allocation3 + $0x10] sm:$0xff]
        %v285 = vld [vmem:[#allocation3 + $0x18] sm:$0xff]
        %v286 = vadd.f32 %v282, %v283
        %287 = vadd.xlane.f32.xlu0 %v286
        %v288 = vpop.xlane.xlu0 %287
        %v289 = vadd.f32 %v284, %v285
        %290 = vadd.xlane.f32.xlu0 %v289
        %v291 = vpop.xlane.xlu0 %290
        %v292 = vmul.f32 %v288, 0.001953125
        %v293 = vmul.f32 %v291, 0.001953125
        %v294 = vmul.f32 %v280, %v280
        %v295 = vmul.f32 %v281, %v281
        %v296 = vsub.f32 %v292, %v294
        %v297 = vsub.f32 %v293, %v295
        %v298 = vmax.f32 %v296, 0.0
        %v299 = vmax.f32 %v297, 0.0
        %v300 = vld [vmem:[%s194] sm:$0xff]
        %v301 = vld [vmem:[%s194 + $0x8] sm:$0xff]
        %v302 = vadd.f32 %v298, 1e-05
        %v303 = vadd.f32 %v299, 1e-05
        %v304 = vrsqrt.pop %v302
        %v305 = vrsqrt.pop %v303
        %v306 = vmul.f32 %v300, %v304
        %v307 = vmul.f32 %v301, %v305
        %v308 = vmul.f32 %v280, %v306
        %v309 = vmul.f32 %v281, %v307
        %312 = vrot.lane.b32.xlu0 %v308, 1
        %v313 = vpop.permute.xlu0 %312
        %314 = vrot.lane.b32.xlu0 %v309, 1
        %v315 = vpop.permute.xlu0 %314
        %v318 = vsub.f32 %v300, %v313
        %v319 = vsub.f32 %v301, %v315
        %v320 = vld [vmem:[%s166] sm:$0xff]
        %v321 = vld [vmem:[%s166 + $0x8] sm:$0xff]
        %v322 = vld [vmem:[%s166 + $0x10] sm:$0xff]
        %v323 = vld [vmem:[%s166 + $0x18] sm:$0xff]
        %325 = vset.pattern.permute.xlu0 0
        %326 = vperm.xlu0 %325, %v306
        %v327 = vpop.permute.xlu0 %326
        %330 = vset.pattern.permute.xlu0 0
        %331 = vperm.xlu0 %330, %v307
        %v332 = vpop.permute.xlu0 %331
        %v334 = vmul.f32 %v320, %v327
        %v335 = vmul.f32 %v321, %v327
        %v336 = vmul.f32 %v322, %v332
        %v337 = vmul.f32 %v323, %v332
        %339 = vset.pattern.permute.xlu0 1
        %340 = vperm.xlu0 %339, %v318
        %v341 = vpop.permute.xlu0 %340
        %344 = vset.pattern.permute.xlu0 1
        %345 = vperm.xlu0 %344, %v319
        %v346 = vpop.permute.xlu0 %345
        %v348 = vadd.f32 %v334, %v341
        %v349 = vadd.f32 %v335, %v341
        %v350 = vadd.f32 %v336, %v346
        %v351 = vadd.f32 %v337, %v346
        %352 = vst [vmem:[%s188] sm:$0xff] %v348
        %353 = vst [vmem:[%s188 + $0x8] sm:$0xff] %v349
        %354 = vst [vmem:[%s188 + $0x10] sm:$0xff] %v350
        %355 = vst [vmem:[%s188 + $0x18] sm:$0xff] %v351
        %v356 = vld [vmem:[%s237] sm:$0xff]
        %v357 = vld [vmem:[%s237 + $0x8] sm:$0xff]
        %v358 = vld [vmem:[%s237 + $0x10] sm:$0xff]
        %v359 = vld [vmem:[%s237 + $0x18] sm:$0xff]
        %v360 = vmul.f32 %v356, %v327
        %v361 = vmul.f32 %v357, %v327
        %v362 = vmul.f32 %v358, %v332
        %v363 = vmul.f32 %v359, %v332
        %v364 = vadd.f32 %v360, %v341
        %v365 = vadd.f32 %v361, %v341
        %v366 = vadd.f32 %v362, %v346
        %v367 = vadd.f32 %v363, %v346
        %s368 = scalar_lea.vmem %s188, 32 [#allocation5]
        %369 = vst [vmem:[%s368] sm:$0xff] %v364
        %370 = vst [vmem:[%s368 + $0x8] sm:$0xff] %v365
        %371 = vst [vmem:[%s368 + $0x10] sm:$0xff] %v366
        %372 = vst [vmem:[%s368 + $0x18] sm:$0xff] %v367
        %s373 = sand.u32 %s73, 1
        %s374 = sand.u32 %s73, 1
        %s375 = smul.addr %s374, 64
        %s376 = scalar_lea.vmem [#allocation5], %s375
        // Predicated region
        $region52: #{batchnorm2d.1} parent=46 // pred_check
          %p377 = pneg %p83
        $region53: #{batchnorm2d.1} parent=46 // pred_check_branch
          %379 = sbr.rel (%p377) target = $region55
        $region54: #{batchnorm2d.1} parent=46 // pred_region
          %s380 = smul.u32 2, %s13
          %s381 = smul.addr %s380, 2
          %s382 = smul.addr %s381, 8
          %s383 = scalar_lea.vmem %s2, %s382
          // Predicated region
          $region56: #{batchnorm2d.1} parent=54 // pred_check
            _
          $region57: #{batchnorm2d.1} parent=54 // pred_check_branch
            %385 = sbr.rel (0) target = $region59
          $region58: #{batchnorm2d.1} parent=54 // pred_region
            // Predicated region
            $region60: #{batchnorm2d.1} parent=58 // pred_check
              _
            $region61: #{batchnorm2d.1} parent=58 // pred_check_branch
              %387 = sbr.rel (0) target = $region63
            $region62: #{batchnorm2d.1} parent=58 // pred_region
              loop: start=0, step=1, limit=1
              $region64: #{batchnorm2d.1} parent=62 // loop_pre_header
                _
              $region65: #{batchnorm2d.1} parent=62 // loop_header
                %s389 = sphi 0, %s393
                %p390 = scmp.ge.s32.totalorder %s389, 1
                %s394 = sphi %s376, %s376
                %s395 = sphi %s383, %s383
              $region66: #{batchnorm2d.1} parent=62 // loop_header_branch
                %392 = sbr.rel (%p390) target = $region70
              $region67: #{batchnorm2d.1} parent=62 // loop_body
                %v396 = vld [vmem:[%s394] sm:$0xff]
                %397 = vst [vmem:[%s395] sm:$0xff] %v396
                %v398 = vld [vmem:[%s394 + $0x8] sm:$0xff]
                %399 = vst [vmem:[%s395 + $0x8] sm:$0xff] %v398
                %v400 = vld [vmem:[%s394 + $0x10] sm:$0xff]
                %401 = vst [vmem:[%s395 + $0x10] sm:$0xff] %v400
                %v402 = vld [vmem:[%s394 + $0x18] sm:$0xff]
                %403 = vst [vmem:[%s395 + $0x18] sm:$0xff] %v402
                %v404 = vld [vmem:[%s394 + $0x20] sm:$0xff]
                %405 = vst [vmem:[%s395 + $0x80] sm:$0xff] %v404
                %v406 = vld [vmem:[%s394 + $0x28] sm:$0xff]
                %407 = vst [vmem:[%s395 + $0x88] sm:$0xff] %v406
                %v408 = vld [vmem:[%s394 + $0x30] sm:$0xff]
                %409 = vst [vmem:[%s395 + $0x90] sm:$0xff] %v408
                %v410 = vld [vmem:[%s394 + $0x38] sm:$0xff]
                %411 = vst [vmem:[%s395 + $0x98] sm:$0xff] %v410
              $region68: #{batchnorm2d.1} parent=62 // loop_footer
                %s393 = sadd.s32 1, %s389
              $region69: #{batchnorm2d.1} parent=62 // loop_footer_branch
                %388 = sbr.rel target = $region65
              $region70: #{batchnorm2d.1} parent=62 // loop_exit
                _
            $region63: #{batchnorm2d.1} parent=58 // pred_fallthru
              _
            // Predicated region
            $region71: #{batchnorm2d.1} parent=58 // pred_check
              _
            $region72: #{batchnorm2d.1} parent=58 // pred_check_branch
              %413 = sbr.rel target = $region74
            $region73: #{batchnorm2d.1} parent=58 // pred_region
              _
            $region74: #{batchnorm2d.1} parent=58 // pred_fallthru
              _
          $region59: #{batchnorm2d.1} parent=54 // pred_fallthru
            _
          %414 = vnop
        $region55: #{batchnorm2d.1} parent=46 // pred_fallthru
          _
      $region47: #{batchnorm2d.1} parent=5 // pred_fallthru
        _
      %p415 = scmp.le.s32.totalorder 2, %s8
      // Predicated region
      $region75: #{batchnorm2d.1} parent=5 // pred_check
        %p416 = pneg %p415
      $region76: #{batchnorm2d.1} parent=5 // pred_check_branch
        %418 = sbr.rel (%p416) target = $region78
      $region77: #{batchnorm2d.1} parent=5 // pred_region
        %s419 = ssub.s32 %s8, 2
        // Predicated region
        $region79: #{batchnorm2d.1} parent=77 // pred_check
          %p420 = pneg %p89
        $region80: #{batchnorm2d.1} parent=77 // pred_check_branch
          %422 = sbr.rel (%p420) target = $region82
        $region81: #{batchnorm2d.1} parent=77 // pred_region
          %s423 = sand.u32 %s74, 1
          %s424 = sand.u32 %s74, 1
          %s425 = smul.addr %s424, 64
          %s426 = scalar_lea.vmem [#allocation5], %s425
        $region82: #{batchnorm2d.1} parent=77 // pred_fallthru
          _
      $region78: #{batchnorm2d.1} parent=5 // pred_fallthru
        _
    $region6: #{batchnorm2d.1} parent=1 // loop_footer
      %s12 = sadd.s32 1, %s8
    $region7: #{batchnorm2d.1} parent=1 // loop_footer_branch
      %7 = sbr.rel target = $region3
    $region8: #{batchnorm2d.1} parent=1 // loop_exit
      _

</llo_original>
